<compile_context>
chip_gen: v7x
topology: tpu7x:2x2x1
jax: 0.10.0
libtpu: 0.0.40
codegen_flags: <defaults>
</compile_context>

<pallas_src>
import functools

import jax
import jax.numpy as jnp
from jax.experimental import pallas as pl
from jax.experimental.pallas import tpu as pltpu


OUT_W = 128  # lane-dense packed output width (one full lane tile)


def _round_up(x, m):
    return ((x + m - 1) // m) * m


def _fused_actor_critic_kernel(state_ref, action_ref,
                               w1_ref, b1_ref, w2_ref, b2_ref, w3_ref, b3_ref,
                               out_ref, *, action_dim):
    A = action_dim
    x = state_ref[...]                                                        # [TB, S]

    # ---- fused actor||critic MLP (3 matmuls instead of 6) ----
    h = jnp.tanh(jnp.dot(x, w1_ref[...], preferred_element_type=jnp.float32) + b1_ref[...])
    h = jnp.tanh(jnp.dot(h, w2_ref[...], preferred_element_type=jnp.float32) + b2_ref[...])
    y = jnp.dot(h, w3_ref[...], preferred_element_type=jnp.float32) + b3_ref[...]  # [TB, 128]
    # y layout: cols [0, A) = actor logits, col A = state value, cols > A = 0.

    lane = jax.lax.broadcasted_iota(jnp.int32, y.shape, 1)                    # [TB, 128]
    valid = lane < A                                                          # logits lanes

    # Numerically stable softmax / log-softmax over the first A lanes only.
    neg_big = jnp.float32(-1e30)
    zl = jnp.where(valid, y, neg_big)
    m = jnp.max(zl, axis=-1, keepdims=True)                                   # [TB, 1]
    z = zl - m
    e = jnp.where(valid, jnp.exp(z), 0.0)
    denom = jnp.sum(e, axis=-1, keepdims=True)                                # [TB, 1]
    log_sm_raw = z - jnp.log(denom)
    log_sm = jnp.where(valid, log_sm_raw, 0.0)                                # masked log-probs
    probs = jnp.where(valid, jnp.exp(log_sm_raw), 0.0)                        # softmax, 0 on pad

    # Categorical.log_prob(action): in-kernel one-hot via iota compare (no host one_hot).
    act = action_ref[...]                                                     # [TB, 1] int32
    onehot = (lane == act).astype(jnp.float32)
    logp = jnp.sum(onehot * log_sm, axis=-1, keepdims=True)                   # [TB, 1]
    # Categorical.entropy(): -sum p * log p
    ent = -jnp.sum(probs * log_sm, axis=-1, keepdims=True)                    # [TB, 1]

    # Pack everything into one lane-dense (TB, 128) slab: probs | value | logp | ent | zeros.
    out = probs
    out = out + jnp.where(lane == A, y, 0.0)           # state value lives in col A of y
    out = out + jnp.where(lane == A + 1, logp, 0.0)
    out = out + jnp.where(lane == A + 2, ent, 0.0)
    out_ref[...] = out


def fuse_params(p):
    """Fuse actor/critic layer weights once (NOT per call). Weights are [in, out]."""
    S = p["aw1"].shape[0]
    H = p["aw2"].shape[0]
    A = p["aw3"].shape[1]
    assert A + 3 <= OUT_W

    w1 = jnp.concatenate([p["aw1"], p["vw1"]], axis=1)                        # [S, 2H]
    b1 = jnp.concatenate([p["ab1"], p["vb1"]], axis=1)                        # [1, 2H]

    zer = jnp.zeros((H, H), jnp.float32)
    w2 = jnp.concatenate(
        [jnp.concatenate([p["aw2"], zer], axis=1),
         jnp.concatenate([zer, p["vw2"]], axis=1)], axis=0)                   # [2H, 2H]
    b2 = jnp.concatenate([p["ab2"], p["vb2"]], axis=1)                        # [1, 2H]

    w3 = jnp.zeros((2 * H, OUT_W), jnp.float32)
    w3 = w3.at[:H, :A].set(p["aw3"])                                          # actor -> logits
    w3 = w3.at[H:, A].set(p["vw3"][:, 0])                                     # critic -> col A
    b3 = jnp.zeros((1, OUT_W), jnp.float32)
    b3 = b3.at[0, :A].set(p["ab3"][0])
    b3 = b3.at[0, A].set(p["vb3"][0, 0])

    return dict(w1=w1, b1=b1, w2=w2, b2=b2, w3=w3, b3=b3,
                state_dim=S, hidden2=2 * H, action_dim=A)


def actor_critic_evaluate(state, action, fused):
    """Pallas implementation of ActorCritic.evaluate(state, action).

    Returns (action_logprobs [B], state_value [B], dist_entropy [B], action_probs [B, A]).
    """
    B, S = state.shape
    A = fused["action_dim"]
    H2 = fused["hidden2"]

    # Batch tile: big rollouts get 512-row tiles (double-buffered, well under VMEM on v7x too);
    # tiny batches just round up to the sublane granule.
    TB = 512 if B >= 512 else _round_up(B, 8)
    Bp = _round_up(B, TB)

    state_p = jnp.pad(state.astype(jnp.float32), ((0, Bp - B), (0, 0)))
    action_p = jnp.pad(action.astype(jnp.int32)[:, None], ((0, Bp - B), (0, 0)))

    w1, b1, w2, b2, w3, b3 = (fused[k] for k in ("w1", "b1", "w2", "b2", "w3", "b3"))

    grid = (Bp // TB,)
    resident = lambda i: (0, 0)  # weights stay in VMEM across batch tiles

    cost = pl.CostEstimate(
        flops=2 * Bp * (S * H2 + H2 * H2 + H2 * OUT_W),
        transcendentals=Bp * (2 * H2 + 2 * OUT_W + 1),
        bytes_accessed=4 * (Bp * S + Bp + Bp * OUT_W
                            + S * H2 + H2 + H2 * H2 + H2 + H2 * OUT_W + OUT_W),
    )

    out = pl.pallas_call(
        functools.partial(_fused_actor_critic_kernel, action_dim=A),
        out_shape=jax.ShapeDtypeStruct((Bp, OUT_W), jnp.float32),
        grid_spec=pltpu.PrefetchScalarGridSpec(
            num_scalar_prefetch=0,
            grid=grid,
            in_specs=[
                pl.BlockSpec((TB, S), lambda i: (i, 0)),      # state tile
                pl.BlockSpec((TB, 1), lambda i: (i, 0)),      # action tile (int32)
                pl.BlockSpec(w1.shape, resident),
                pl.BlockSpec(b1.shape, resident),
                pl.BlockSpec(w2.shape, resident),
                pl.BlockSpec(b2.shape, resident),
                pl.BlockSpec(w3.shape, resident),
                pl.BlockSpec(b3.shape, resident),
            ],
            out_specs=pl.BlockSpec((TB, OUT_W), lambda i: (i, 0)),
        ),
        compiler_params=pltpu.CompilerParams(dimension_semantics=("parallel",)),
        cost_estimate=cost,
    )(state_p, action_p, w1, b1, w2, b2, w3, b3)

    probs = out[:B, :A]
    value = out[:B, A]
    logp = out[:B, A + 1]
    ent = out[:B, A + 2]
    return logp, value, ent, probs


def init_params(key, state_dim, action_dim, n_latent_var):
    """Deterministic init mimicking nn.Linear default (uniform +/- 1/sqrt(fan_in)).

    Weights stored as [in, out] (transposed vs PyTorch's [out, in]).
    """
    def linear(k, fan_in, fan_out):
        k_w, k_b = jax.random.split(k)
        bound = 1.0 / jnp.sqrt(fan_in)
        w = jax.random.uniform(k_w, (fan_in, fan_out), jnp.float32, -bound, bound)
        b = jax.random.uniform(k_b, (1, fan_out), jnp.float32, -bound, bound)
        return w, b

    keys = jax.random.split(key, 6)
    aw1, ab1 = linear(keys[0], state_dim, n_latent_var)
    aw2, ab2 = linear(keys[1], n_latent_var, n_latent_var)
    aw3, ab3 = linear(keys[2], n_latent_var, action_dim)
    vw1, vb1 = linear(keys[3], state_dim, n_latent_var)
    vw2, vb2 = linear(keys[4], n_latent_var, n_latent_var)
    vw3, vb3 = linear(keys[5], n_latent_var, 1)
    return dict(aw1=aw1, ab1=ab1, aw2=aw2, ab2=ab2, aw3=aw3, ab3=ab3,
                vw1=vw1, vb1=vb1, vw2=vw2, vb2=vb2, vw3=vw3, vb3=vb3)


def reference_evaluate(state, action, params):
    """Pure-JAX reference of ActorCritic.evaluate for correctness checking."""
    h = jnp.tanh(state @ params["aw1"] + params["ab1"])
    h = jnp.tanh(h @ params["aw2"] + params["ab2"])
    logits = h @ params["aw3"] + params["ab3"]
    log_sm = jax.nn.log_softmax(logits, axis=-1)
    probs = jax.nn.softmax(logits, axis=-1)
    logp = jnp.take_along_axis(log_sm, action[:, None], axis=-1)[:, 0]
    ent = -jnp.sum(probs * log_sm, axis=-1)
    g = jnp.tanh(state @ params["vw1"] + params["vb1"])
    g = jnp.tanh(g @ params["vw2"] + params["vb2"])
    value = (g @ params["vw3"] + params["vb3"])[:, 0]
    return logp, value, ent, probs


if __name__ == "__main__":
    # LunarLander-v2: state_dim=8, action_dim=4; small hidden size for the test.
    state_dim, action_dim, n_latent_var = 8, 4, 32

    key = jax.random.PRNGKey(0)
    k_params, k_data = jax.random.split(key)

    params = init_params(k_params, state_dim, action_dim, n_latent_var)
    fused = fuse_params(params)

    # Small batch (single tile) + a larger batch that exercises the grid + padding path.
    for batch in (8, 600):
        k_state, k_act = jax.random.split(jax.random.fold_in(k_data, batch))
        state = jax.random.normal(k_state, (batch, state_dim), jnp.float32)
        action = jax.random.randint(k_act, (batch,), 0, action_dim, jnp.int32)

        logp, value, ent, probs = actor_critic_evaluate(state, action, fused)
        jax.block_until_ready((logp, value, ent, probs))

        logp_r, value_r, ent_r, probs_r = reference_evaluate(state, action, params)
        assert jnp.allclose(logp, logp_r, atol=1e-4), f"log_prob mismatch (B={batch})"
        assert jnp.allclose(value, value_r, atol=1e-4), f"value mismatch (B={batch})"
        assert jnp.allclose(ent, ent_r, atol=1e-4), f"entropy mismatch (B={batch})"
        assert jnp.allclose(probs, probs_r, atol=1e-4), f"probs mismatch (B={batch})"
        assert jnp.allclose(jnp.sum(probs, axis=-1), 1.0, atol=1e-4)

    print("KERNEL_OK")
</pallas_src>

<mosaic_0001>
module attributes {stable_mosaic.version = 11 : i64} {
  func.func @_fused_actor_critic_kernel(%arg0: i32, %arg1: memref<8x8xf32, #tpu.memory_space<vmem>>, %arg2: memref<8x1xi32, #tpu.memory_space<vmem>>, %arg3: memref<8x64xf32, #tpu.memory_space<vmem>>, %arg4: memref<1x64xf32, #tpu.memory_space<vmem>>, %arg5: memref<64x64xf32, #tpu.memory_space<vmem>>, %arg6: memref<1x64xf32, #tpu.memory_space<vmem>>, %arg7: memref<64x128xf32, #tpu.memory_space<vmem>>, %arg8: memref<1x128xf32, #tpu.memory_space<vmem>>, %arg9: memref<8x128xf32, #tpu.memory_space<vmem>>) attributes {dimension_semantics = [#tpu.dimension_semantics<parallel>], iteration_bounds = array<i64: 1>, scalar_prefetch = 0 : i64, scratch_operands = 0 : i64, tpu.core_type = #tpu.core_type<tc>, window_params = [{transform_indices = @transform_0, window_bounds = array<i64: 8, 8>}, {transform_indices = @transform_1, window_bounds = array<i64: 8, 1>}, {pipeline_mode = #tpu.pipeline_mode<synchronous>, transform_indices = @transform_2, window_bounds = array<i64: 8, 64>}, {pipeline_mode = #tpu.pipeline_mode<synchronous>, transform_indices = @transform_3, window_bounds = array<i64: 1, 64>}, {pipeline_mode = #tpu.pipeline_mode<synchronous>, transform_indices = @transform_4, window_bounds = array<i64: 64, 64>}, {pipeline_mode = #tpu.pipeline_mode<synchronous>, transform_indices = @transform_5, window_bounds = array<i64: 1, 64>}, {pipeline_mode = #tpu.pipeline_mode<synchronous>, transform_indices = @transform_6, window_bounds = array<i64: 64, 128>}, {pipeline_mode = #tpu.pipeline_mode<synchronous>, transform_indices = @transform_7, window_bounds = array<i64: 1, 128>}, {transform_indices = @transform_8, window_bounds = array<i64: 8, 128>}]} {
    %c0 = arith.constant 0 : index
    %c0_0 = arith.constant 0 : index
    %0 = vector.load %arg1[%c0, %c0_0] : memref<8x8xf32, #tpu.memory_space<vmem>>, vector<8x8xf32>
    %c0_1 = arith.constant 0 : index
    %c0_2 = arith.constant 0 : index
    %1 = vector.load %arg3[%c0_1, %c0_2] : memref<8x64xf32, #tpu.memory_space<vmem>>, vector<8x64xf32>
    %cst = arith.constant dense<0.000000e+00> : vector<8x64xf32>
    %2 = tpu.matmul %0, %1, %cst {dimension_numbers = #tpu.dot_dimension_numbers<[1], [0], [0], [1], [0, 0, 1, 1], [], []>} : vector<8x8xf32>, vector<8x64xf32>, vector<8x64xf32> -> vector<8x64xf32>
    %c0_3 = arith.constant 0 : index
    %c0_4 = arith.constant 0 : index
    %3 = vector.load %arg4[%c0_3, %c0_4] : memref<1x64xf32, #tpu.memory_space<vmem>>, vector<1x64xf32>
    %4 = vector.broadcast %3 : vector<1x64xf32> to vector<8x64xf32>
    %5 = arith.addf %2, %4 : vector<8x64xf32>
    %6 = math.tanh %5 : vector<8x64xf32>
    %c0_5 = arith.constant 0 : index
    %c0_6 = arith.constant 0 : index
    %7 = vector.load %arg5[%c0_5, %c0_6] : memref<64x64xf32, #tpu.memory_space<vmem>>, vector<64x64xf32>
    %cst_7 = arith.constant dense<0.000000e+00> : vector<8x64xf32>
    %8 = tpu.matmul %6, %7, %cst_7 {dimension_numbers = #tpu.dot_dimension_numbers<[1], [0], [0], [1], [0, 0, 1, 1], [], []>} : vector<8x64xf32>, vector<64x64xf32>, vector<8x64xf32> -> vector<8x64xf32>
    %c0_8 = arith.constant 0 : index
    %c0_9 = arith.constant 0 : index
    %9 = vector.load %arg6[%c0_8, %c0_9] : memref<1x64xf32, #tpu.memory_space<vmem>>, vector<1x64xf32>
    %10 = vector.broadcast %9 : vector<1x64xf32> to vector<8x64xf32>
    %11 = arith.addf %8, %10 : vector<8x64xf32>
    %12 = math.tanh %11 : vector<8x64xf32>
    %c0_10 = arith.constant 0 : index
    %c0_11 = arith.constant 0 : index
    %13 = vector.load %arg7[%c0_10, %c0_11] : memref<64x128xf32, #tpu.memory_space<vmem>>, vector<64x128xf32>
    %cst_12 = arith.constant dense<0.000000e+00> : vector<8x128xf32>
    %14 = tpu.matmul %12, %13, %cst_12 {dimension_numbers = #tpu.dot_dimension_numbers<[1], [0], [0], [1], [0, 0, 1, 1], [], []>} : vector<8x64xf32>, vector<64x128xf32>, vector<8x128xf32> -> vector<8x128xf32>
    %c0_13 = arith.constant 0 : index
    %c0_14 = arith.constant 0 : index
    %15 = vector.load %arg8[%c0_13, %c0_14] : memref<1x128xf32, #tpu.memory_space<vmem>>, vector<1x128xf32>
    %16 = vector.broadcast %15 : vector<1x128xf32> to vector<8x128xf32>
    %17 = arith.addf %14, %16 : vector<8x128xf32>
    %18 = tpu.iota {dimensions = array<i32: 1>} : vector<8x128xi32>
    %c4_i32 = arith.constant 4 : i32
    %19 = vector.broadcast %c4_i32 : i32 to vector<8x128xi32>
    %20 = arith.cmpi slt, %18, %19 : vector<8x128xi32>
    %cst_15 = arith.constant -1.000000e+30 : f32
    %21 = vector.broadcast %cst_15 : f32 to vector<8x128xf32>
    %22 = arith.select %20, %17, %21 : vector<8x128xi1>, vector<8x128xf32>
    %cst_16 = arith.constant dense<0xFF800000> : vector<8xf32>
    %23 = vector.multi_reduction <maximumf>, %22, %cst_16 [1] : vector<8x128xf32> to vector<8xf32>
    %24 = vector.shape_cast %23 : vector<8xf32> to vector<8x1xf32>
    %25 = vector.broadcast %24 : vector<8x1xf32> to vector<8x128xf32>
    %26 = arith.subf %22, %25 : vector<8x128xf32>
    %27 = math.exp %26 : vector<8x128xf32>
    %cst_17 = arith.constant 0.000000e+00 : f32
    %28 = vector.broadcast %cst_17 : f32 to vector<8x128xf32>
    %29 = arith.select %20, %27, %28 : vector<8x128xi1>, vector<8x128xf32>
    %cst_18 = arith.constant dense<0.000000e+00> : vector<8xf32>
    %30 = vector.multi_reduction <add>, %29, %cst_18 [1] : vector<8x128xf32> to vector<8xf32>
    %31 = vector.shape_cast %30 : vector<8xf32> to vector<8x1xf32>
    %32 = math.log %31 : vector<8x1xf32>
    %33 = vector.broadcast %32 : vector<8x1xf32> to vector<8x128xf32>
    %34 = arith.subf %26, %33 : vector<8x128xf32>
    %cst_19 = arith.constant 0.000000e+00 : f32
    %35 = vector.broadcast %cst_19 : f32 to vector<8x128xf32>
    %36 = arith.select %20, %34, %35 : vector<8x128xi1>, vector<8x128xf32>
    %37 = math.exp %34 : vector<8x128xf32>
    %cst_20 = arith.constant 0.000000e+00 : f32
    %38 = vector.broadcast %cst_20 : f32 to vector<8x128xf32>
    %39 = arith.select %20, %37, %38 : vector<8x128xi1>, vector<8x128xf32>
    %c0_21 = arith.constant 0 : index
    %c0_22 = arith.constant 0 : index
    %40 = vector.load %arg2[%c0_21, %c0_22] : memref<8x1xi32, #tpu.memory_space<vmem>>, vector<8x1xi32>
    %41 = vector.broadcast %40 : vector<8x1xi32> to vector<8x128xi32>
    %42 = arith.cmpi eq, %18, %41 : vector<8x128xi32>
    %43 = arith.extui %42 : vector<8x128xi1> to vector<8x128xi32>
    %44 = arith.sitofp %43 : vector<8x128xi32> to vector<8x128xf32>
    %45 = arith.mulf %44, %36 : vector<8x128xf32>
    %cst_23 = arith.constant dense<0.000000e+00> : vector<8xf32>
    %46 = vector.multi_reduction <add>, %45, %cst_23 [1] : vector<8x128xf32> to vector<8xf32>
    %47 = vector.shape_cast %46 : vector<8xf32> to vector<8x1xf32>
    %48 = arith.mulf %39, %36 : vector<8x128xf32>
    %cst_24 = arith.constant dense<0.000000e+00> : vector<8xf32>
    %49 = vector.multi_reduction <add>, %48, %cst_24 [1] : vector<8x128xf32> to vector<8xf32>
    %50 = vector.shape_cast %49 : vector<8xf32> to vector<8x1xf32>
    %cst_25 = arith.constant 0.000000e+00 : f32
    %51 = vector.broadcast %cst_25 : f32 to vector<8x1xf32>
    %52 = arith.subf %51, %50 : vector<8x1xf32>
    %c4_i32_26 = arith.constant 4 : i32
    %53 = vector.broadcast %c4_i32_26 : i32 to vector<8x128xi32>
    %54 = arith.cmpi eq, %18, %53 : vector<8x128xi32>
    %cst_27 = arith.constant 0.000000e+00 : f32
    %55 = vector.broadcast %cst_27 : f32 to vector<8x128xf32>
    %56 = arith.select %54, %17, %55 : vector<8x128xi1>, vector<8x128xf32>
    %57 = arith.addf %39, %56 : vector<8x128xf32>
    %c5_i32 = arith.constant 5 : i32
    %58 = vector.broadcast %c5_i32 : i32 to vector<8x128xi32>
    %59 = arith.cmpi eq, %18, %58 : vector<8x128xi32>
    %cst_28 = arith.constant 0.000000e+00 : f32
    %60 = vector.shape_cast %47 : vector<8x1xf32> to vector<8x1xf32>
    %61 = vector.broadcast %60 : vector<8x1xf32> to vector<8x128xf32>
    %62 = vector.broadcast %cst_28 : f32 to vector<8x128xf32>
    %63 = arith.select %59, %61, %62 : vector<8x128xi1>, vector<8x128xf32>
    %64 = arith.addf %57, %63 : vector<8x128xf32>
    %c6_i32 = arith.constant 6 : i32
    %65 = vector.broadcast %c6_i32 : i32 to vector<8x128xi32>
    %66 = arith.cmpi eq, %18, %65 : vector<8x128xi32>
    %cst_29 = arith.constant 0.000000e+00 : f32
    %67 = vector.shape_cast %52 : vector<8x1xf32> to vector<8x1xf32>
    %68 = vector.broadcast %67 : vector<8x1xf32> to vector<8x128xf32>
    %69 = vector.broadcast %cst_29 : f32 to vector<8x128xf32>
    %70 = arith.select %66, %68, %69 : vector<8x128xi1>, vector<8x128xf32>
    %71 = arith.addf %64, %70 : vector<8x128xf32>
    %c0_30 = arith.constant 0 : index
    %c0_31 = arith.constant 0 : index
    %72 = vector.load %arg9[%c0_30, %c0_31] : memref<8x128xf32, #tpu.memory_space<vmem>>, vector<8x128xf32>
    tpu.vector_store %arg9[%c0_30, %c0_31], %71 {strides = array<i32>} : memref<8x128xf32, #tpu.memory_space<vmem>>, vector<8x128xf32>,
    return
  }
  func.func @transform_0(%arg0: i32) -> (i32, i32) {
    %c0_i32 = arith.constant 0 : i32
    %c0_i32_0 = arith.constant 0 : i32
    return %arg0, %c0_i32 : i32, i32
  }
  func.func @transform_1(%arg0: i32) -> (i32, i32) {
    %c0_i32 = arith.constant 0 : i32
    %c0_i32_0 = arith.constant 0 : i32
    return %arg0, %c0_i32 : i32, i32
  }
  func.func @transform_2(%arg0: i32) -> (i32, i32) {
    %c0_i32 = arith.constant 0 : i32
    %c0_i32_0 = arith.constant 0 : i32
    %c0_i32_1 = arith.constant 0 : i32
    return %c0_i32, %c0_i32_0 : i32, i32
  }
  func.func @transform_3(%arg0: i32) -> (i32, i32) {
    %c0_i32 = arith.constant 0 : i32
    %c0_i32_0 = arith.constant 0 : i32
    %c0_i32_1 = arith.constant 0 : i32
    return %c0_i32, %c0_i32_0 : i32, i32
  }
  func.func @transform_4(%arg0: i32) -> (i32, i32) {
    %c0_i32 = arith.constant 0 : i32
    %c0_i32_0 = arith.constant 0 : i32
    %c0_i32_1 = arith.constant 0 : i32
    return %c0_i32, %c0_i32_0 : i32, i32
  }
  func.func @transform_5(%arg0: i32) -> (i32, i32) {
    %c0_i32 = arith.constant 0 : i32
    %c0_i32_0 = arith.constant 0 : i32
    %c0_i32_1 = arith.constant 0 : i32
    return %c0_i32, %c0_i32_0 : i32, i32
  }
  func.func @transform_6(%arg0: i32) -> (i32, i32) {
    %c0_i32 = arith.constant 0 : i32
    %c0_i32_0 = arith.constant 0 : i32
    %c0_i32_1 = arith.constant 0 : i32
    return %c0_i32, %c0_i32_0 : i32, i32
  }
  func.func @transform_7(%arg0: i32) -> (i32, i32) {
    %c0_i32 = arith.constant 0 : i32
    %c0_i32_0 = arith.constant 0 : i32
    %c0_i32_1 = arith.constant 0 : i32
    return %c0_i32, %c0_i32_0 : i32, i32
  }
  func.func @transform_8(%arg0: i32) -> (i32, i32) {
    %c0_i32 = arith.constant 0 : i32
    %c0_i32_0 = arith.constant 0 : i32
    return %arg0, %c0_i32 : i32, i32
  }
}

</mosaic_0001>

<llo_original>
// kernel: tpu_custom_call.1
$region0: #{tpu_custom_call.1}
  #allocation0 [shape = 'u32[]', space=smem, size = 0x4, offset = 0x4, fixed_abs, tag = 'smem constant byte address 0x4 - core index']
  #allocation1 [shape = 'u32[144,128]{1,0:T(1,128)}', space=vmem, size = 0x12000, scoped, tag = 'internal scratch']
  %s0 = inlined_call_operand.vmem [shape: f32[8,8], index: 0, kind: input, shape index: {}]
  %s1 = inlined_call_operand.vmem [shape: s32[8,1], index: 1, kind: input, shape index: {}]
  %s2 = inlined_call_operand.vmem [shape: f32[8,64], index: 2, kind: input, shape index: {}]
  %s3 = inlined_call_operand.vmem [shape: f32[1,64], index: 3, kind: input, shape index: {}]
  %s4 = inlined_call_operand.hbm [shape: f32[64,64], index: 4, kind: input, shape index: {}]
  %s5 = inlined_call_operand.vmem [shape: f32[1,64], index: 5, kind: input, shape index: {}]
  %s6 = inlined_call_operand.hbm [shape: f32[64,128], index: 6, kind: input, shape index: {}]
  %s7 = inlined_call_operand.vmem [shape: f32[1,128], index: 7, kind: input, shape index: {}]
  %s8 = inlined_call_operand.hbm [shape: f32[8,128], index: 8, kind: output, shape index: {}]
  %s9 = sld [smem:[#allocation0]]
  $region50: #{tpu_custom_call.1} parent=0
    _
  %s11 = ssub.s32 1, %s9
  %s12 = scalar_select 0, %s11, %s9
  $region1: #{tpu_custom_call.1} parent=0
    #allocation2 [shape = 'u8[32768]{0}', space=vmem, size = 0x8000, scoped, tag = 'input window, operand 4, single buffered']
    #allocation3 [shape = 's32[1]{0}', space=sflag, size = 0x4, scoped, tag = 'scoped memory for tpu_custom_call.1']
    #allocation4 [shape = 's32[1]{0}', space=sflag, size = 0x4, scoped, tag = 'scoped memory for tpu_custom_call.1']
    #allocation5 [shape = 'u8[32768]{0}', space=vmem, size = 0x8000, scoped, tag = 'input window, operand 6, single buffered']
    #allocation6 [shape = 's32[1]{0}', space=sflag, size = 0x4, scoped, tag = 'scoped memory for tpu_custom_call.1']
    #allocation7 [shape = 'u8[4096]{0}', space=vmem, size = 0x1000, scoped, tag = 'output window, operand 0, single buffered']
    %13 = vsyncpa [#allocation3], 0
    %14 = vsyncpa [#allocation6], 0
    %15 = vsyncpa [#allocation4], 0
    // Predicated region
    $region2: #{tpu_custom_call.1} parent=1 // pred_check
      _
    $region3: #{tpu_custom_call.1} parent=1 // pred_check_branch
      %17 = sbr.rel (0) target = $region5
    $region4: #{tpu_custom_call.1} parent=1 // pred_region
      _
    $region5: #{tpu_custom_call.1} parent=1 // pred_fallthru
      _
    // Predicated region
    $region6: #{tpu_custom_call.1} parent=1 // pred_check
      _
    $region7: #{tpu_custom_call.1} parent=1 // pred_check_branch
      %19 = sbr.rel (0) target = $region9
    $region8: #{tpu_custom_call.1} parent=1 // pred_region
      _
    $region9: #{tpu_custom_call.1} parent=1 // pred_fallthru
      _
    // Predicated region
    $region10: #{tpu_custom_call.1} parent=1 // pred_check
      _
    $region11: #{tpu_custom_call.1} parent=1 // pred_check_branch
      %21 = sbr.rel (0) target = $region13
    $region12: #{tpu_custom_call.1} parent=1 // pred_region
      _
    $region13: #{tpu_custom_call.1} parent=1 // pred_fallthru
      _
    // Predicated region
    $region14: #{tpu_custom_call.1} parent=1 // pred_check
      _
    $region15: #{tpu_custom_call.1} parent=1 // pred_check_branch
      %23 = sbr.rel (0) target = $region17
    $region16: #{tpu_custom_call.1} parent=1 // pred_region
      _
    $region17: #{tpu_custom_call.1} parent=1 // pred_fallthru
      _
    // Predicated region
    $region18: #{tpu_custom_call.1} parent=1 // pred_check
      _
    $region19: #{tpu_custom_call.1} parent=1 // pred_check_branch
      %25 = sbr.rel (0) target = $region21
    $region20: #{tpu_custom_call.1} parent=1 // pred_region
      %s27 = ssub.s32 1024, 1024
      %28 = vsyncadd [#allocation3], %s27
      %s29 = sshll.u32 [#allocation2], 4
      %s30 = int_to_ptr.vmem [resolvable:$true] %s29
      %35 = dma.hbm_to_vmem [thread:$0]  %s4, 1024, %s30, [#allocation3], 128, 128, 8
    $region21: #{tpu_custom_call.1} parent=1 // pred_fallthru
      _
    // Predicated region
    $region22: #{tpu_custom_call.1} parent=1 // pred_check
      _
    $region23: #{tpu_custom_call.1} parent=1 // pred_check_branch
      %37 = sbr.rel (0) target = $region25
    $region24: #{tpu_custom_call.1} parent=1 // pred_region
      _
    $region25: #{tpu_custom_call.1} parent=1 // pred_fallthru
      _
    // Predicated region
    $region26: #{tpu_custom_call.1} parent=1 // pred_check
      _
    $region27: #{tpu_custom_call.1} parent=1 // pred_check_branch
      %39 = sbr.rel (0) target = $region29
    $region28: #{tpu_custom_call.1} parent=1 // pred_region
      %s41 = ssub.s32 1024, 1024
      %42 = vsyncadd [#allocation6], %s41
      %s43 = sshll.u32 [#allocation5], 4
      %s44 = int_to_ptr.vmem [resolvable:$true] %s43
      %49 = dma.hbm_to_vmem [thread:$0]  %s6, 1024, %s44, [#allocation6], 128, 128, 8
    $region29: #{tpu_custom_call.1} parent=1 // pred_fallthru
      _
    // Predicated region
    $region30: #{tpu_custom_call.1} parent=1 // pred_check
      _
    $region31: #{tpu_custom_call.1} parent=1 // pred_check_branch
      %51 = sbr.rel (0) target = $region33
    $region32: #{tpu_custom_call.1} parent=1 // pred_region
      _
    $region33: #{tpu_custom_call.1} parent=1 // pred_fallthru
      _
    // Predicated region
    $region34: #{tpu_custom_call.1} parent=1 // pred_check
      _
    $region35: #{tpu_custom_call.1} parent=1 // pred_check_branch
      %53 = sbr.rel (0) target = $region37
    $region36: #{tpu_custom_call.1} parent=1 // pred_region
      %54 = dma.done [#allocation3], 1024
    $region37: #{tpu_custom_call.1} parent=1 // pred_fallthru
      _
    // Predicated region
    $region38: #{tpu_custom_call.1} parent=1 // pred_check
      _
    $region39: #{tpu_custom_call.1} parent=1 // pred_check_branch
      %56 = sbr.rel (0) target = $region41
    $region40: #{tpu_custom_call.1} parent=1 // pred_region
      %57 = dma.done [#allocation6], 1024
    $region41: #{tpu_custom_call.1} parent=1 // pred_fallthru
      _
    %v58 = vld [vmem:[%s0] sm:$0xff]
    %v59 = vld [vmem:[%s2] sm:$0xff]
    %v60 = vld [vmem:[%s3] sm:$0x1]
    %v62 = vlaneseq
    %v63 = vshrl.u32 %v62, 7
    %v64 = vsub.s32 0, %v63
    %v65 = vrot.slane %v60, %v64
    %vm67 = vcmask 64512
    %v69 = vsel %vm67, %v58, 0
    %71 = vmatprep.subr.mxu0 0.0
    %72 = vmatpush1.msra.mxu0 %v59
    %73 = vmatprep.subr.mxu0 0.0
    %74 = vmatpush1.msra.mxu0 0.0
    %75 = vmatprep.subr.mxu0 0.0
    %76 = vmatpush1.msra.mxu0 0.0
    %77 = vmatprep.subr.mxu0 0.0
    %78 = vmatpush1.msra.mxu0 0.0
    %79 = vmatprep.subr.mxu0 0.0
    %80 = vmatpush1.msra.mxu0 0.0
    %81 = vmatprep.subr.mxu0 0.0
    %82 = vmatpush1.msra.mxu0 0.0
    %83 = vmatprep.subr.mxu0 0.0
    %84 = vmatpush1.msra.mxu0 0.0
    %85 = vmatprep.subr.mxu0 0.0
    %86 = vmatpush1.msra.mxu0 0.0
    %87 = vmatprep.subr.mxu0 0.0
    %88 = vmatpush1.msra.mxu0 0.0
    %89 = vmatprep.subr.mxu0 0.0
    %90 = vmatpush1.msra.mxu0 0.0
    %91 = vmatprep.subr.mxu0 0.0
    %92 = vmatpush1.msra.mxu0 0.0
    %93 = vmatprep.subr.mxu0 0.0
    %94 = vmatpush1.msra.mxu0 0.0
    %95 = vmatprep.subr.mxu0 0.0
    %96 = vmatpush1.msra.mxu0 0.0
    %97 = vmatprep.subr.mxu0 0.0
    %98 = vmatpush1.msra.mxu0 0.0
    %99 = vmatprep.subr.mxu0 0.0
    %100 = vmatpush1.msra.mxu0 0.0
    %101 = vmatprep.subr.mxu0 0.0
    %102 = vmatpush1.msra.mxu0 0.0
    %103 = vmatprep.subr.mxu0 0.0
    %104 = vmatpush1.msra.mxu0 0.0
    %105 = vmatprep.subr.mxu0 0.0
    %106 = vmatpush1.msra.mxu0 0.0
    %107 = vmatprep.subr.mxu0 0.0
    %108 = vmatpush1.msra.mxu0 0.0
    %109 = vmatprep.subr.mxu0 0.0
    %110 = vmatpush1.msra.mxu0 0.0
    %111 = vmatprep.subr.mxu0 0.0
    %112 = vmatpush1.msra.mxu0 0.0
    %113 = vmatprep.subr.mxu0 0.0
    %114 = vmatpush1.msra.mxu0 0.0
    %115 = vmatprep.subr.mxu0 0.0
    %116 = vmatpush1.msra.mxu0 0.0
    %117 = vmatprep.subr.mxu0 0.0
    %118 = vmatpush1.msra.mxu0 0.0
    %119 = vmatprep.subr.mxu0 0.0
    %120 = vmatpush1.msra.mxu0 0.0
    %121 = vmatprep.subr.mxu0 0.0
    %122 = vmatpush1.msra.mxu0 0.0
    %123 = vmatprep.subr.mxu0 0.0
    %124 = vmatpush1.msra.mxu0 0.0
    %125 = vmatprep.subr.mxu0 0.0
    %126 = vmatpush1.msra.mxu0 0.0
    %127 = vmatprep.subr.mxu0 0.0
    %128 = vmatpush1.msra.mxu0 0.0
    %129 = vmatprep.subr.mxu0 0.0
    %130 = vmatpush1.msra.mxu0 0.0
    %131 = vmatprep.subr.mxu0 0.0
    %132 = vmatpush1.msra.mxu0 0.0
    %133 = vmatprep.subr.mxu0 0.0
    %134 = vmatpush1.msra.mxu0 0.0
    %135 = vmatprep.mubr.f32.mxu0 0.0
    %136 = vmatmul.mubr.f32.gmra.mrb[0].mxu0 %v69
    %v137 = vpop.f32.mrb[0].mxu0
    %v138 = vadd.f32 %v65, %v137
    %v139 = vpop.f32.mrb[0].mxu0
    %140 = vdwg.mxu0
    %v141 = vtanh.pop %v138
    %v142 = vld [vmem:[#allocation2] sm:$0xff]
    %v143 = vld [vmem:[#allocation2 + $0x8] sm:$0xff]
    %v144 = vld [vmem:[#allocation2 + $0x10] sm:$0xff]
    %v145 = vld [vmem:[#allocation2 + $0x18] sm:$0xff]
    %v146 = vld [vmem:[#allocation2 + $0x20] sm:$0xff]
    %v147 = vld [vmem:[#allocation2 + $0x28] sm:$0xff]
    %v148 = vld [vmem:[#allocation2 + $0x30] sm:$0xff]
    %v149 = vld [vmem:[#allocation2 + $0x38] sm:$0xff]
    %v150 = vld [vmem:[%s5] sm:$0x1]
    %v152 = vlaneseq
    %v153 = vshrl.u32 %v152, 7
    %v154 = vsub.s32 0, %v153
    %v155 = vrot.slane %v150, %v154
    %vm157 = vcmask 523264
    %v159 = vsel %vm157, %v141, 0
    %161 = vmatprep.subr.mxu0 0.0
    %162 = vmatpush1.msra.mxu0 %v142
    %163 = vmatprep.subr.mxu0 0.0
    %164 = vmatpush1.msra.mxu0 %v143
    %165 = vmatprep.subr.mxu0 0.0
    %166 = vmatpush1.msra.mxu0 %v144
    %167 = vmatprep.subr.mxu0 0.0
    %168 = vmatpush1.msra.mxu0 %v145
    %169 = vmatprep.subr.mxu0 0.0
    %170 = vmatpush1.msra.mxu0 %v146
    %171 = vmatprep.subr.mxu0 0.0
    %172 = vmatpush1.msra.mxu0 %v147
    %173 = vmatprep.subr.mxu0 0.0
    %174 = vmatpush1.msra.mxu0 %v148
    %175 = vmatprep.subr.mxu0 0.0
    %176 = vmatpush1.msra.mxu0 %v149
    %177 = vmatprep.subr.mxu0 0.0
    %178 = vmatpush1.msra.mxu0 0.0
    %179 = vmatprep.subr.mxu0 0.0
    %180 = vmatpush1.msra.mxu0 0.0
    %181 = vmatprep.subr.mxu0 0.0
    %182 = vmatpush1.msra.mxu0 0.0
    %183 = vmatprep.subr.mxu0 0.0
    %184 = vmatpush1.msra.mxu0 0.0
    %185 = vmatprep.subr.mxu0 0.0
    %186 = vmatpush1.msra.mxu0 0.0
    %187 = vmatprep.subr.mxu0 0.0
    %188 = vmatpush1.msra.mxu0 0.0
    %189 = vmatprep.subr.mxu0 0.0
    %190 = vmatpush1.msra.mxu0 0.0
    %191 = vmatprep.subr.mxu0 0.0
    %192 = vmatpush1.msra.mxu0 0.0
    %193 = vmatprep.subr.mxu0 0.0
    %194 = vmatpush1.msra.mxu0 0.0
    %195 = vmatprep.subr.mxu0 0.0
    %196 = vmatpush1.msra.mxu0 0.0
    %197 = vmatprep.subr.mxu0 0.0
    %198 = vmatpush1.msra.mxu0 0.0
    %199 = vmatprep.subr.mxu0 0.0
    %200 = vmatpush1.msra.mxu0 0.0
    %201 = vmatprep.subr.mxu0 0.0
    %202 = vmatpush1.msra.mxu0 0.0
    %203 = vmatprep.subr.mxu0 0.0
    %204 = vmatpush1.msra.mxu0 0.0
    %205 = vmatprep.subr.mxu0 0.0
    %206 = vmatpush1.msra.mxu0 0.0
    %207 = vmatprep.subr.mxu0 0.0
    %208 = vmatpush1.msra.mxu0 0.0
    %209 = vmatprep.subr.mxu0 0.0
    %210 = vmatpush1.msra.mxu0 0.0
    %211 = vmatprep.subr.mxu0 0.0
    %212 = vmatpush1.msra.mxu0 0.0
    %213 = vmatprep.subr.mxu0 0.0
    %214 = vmatpush1.msra.mxu0 0.0
    %215 = vmatprep.subr.mxu0 0.0
    %216 = vmatpush1.msra.mxu0 0.0
    %217 = vmatprep.subr.mxu0 0.0
    %218 = vmatpush1.msra.mxu0 0.0
    %219 = vmatprep.subr.mxu0 0.0
    %220 = vmatpush1.msra.mxu0 0.0
    %221 = vmatprep.subr.mxu0 0.0
    %222 = vmatpush1.msra.mxu0 0.0
    %223 = vmatprep.subr.mxu0 0.0
    %224 = vmatpush1.msra.mxu0 0.0
    %225 = vmatprep.mubr.f32.mxu0 0.0
    %226 = vmatmul.mubr.f32.gmra.mrb[0].mxu0 %v159
    %v227 = vpop.f32.mrb[0].mxu0
    %v228 = vadd.f32 %v155, %v227
    %v229 = vpop.f32.mrb[0].mxu0
    %230 = vdwg.mxu0
    %v231 = vtanh.pop %v228
    %v232 = vld [vmem:[#allocation5] sm:$0xff]
    %v233 = vld [vmem:[#allocation5 + $0x8] sm:$0xff]
    %v234 = vld [vmem:[#allocation5 + $0x10] sm:$0xff]
    %v235 = vld [vmem:[#allocation5 + $0x18] sm:$0xff]
    %v236 = vld [vmem:[#allocation5 + $0x20] sm:$0xff]
    %v237 = vld [vmem:[#allocation5 + $0x28] sm:$0xff]
    %v238 = vld [vmem:[#allocation5 + $0x30] sm:$0xff]
    %v239 = vld [vmem:[#allocation5 + $0x38] sm:$0xff]
    %v240 = vld [vmem:[%s7] sm:$0x1]
    %v242 = vlaneseq
    %v243 = vshrl.u32 %v242, 7
    %v244 = vsub.s32 0, %v243
    %v245 = vrot.slane %v240, %v244
    %v248 = vsel %vm157, %v231, 0
    %250 = vmatprep.subr.mxu0 0.0
    %251 = vmatpush1.msra.mxu0 %v232
    %252 = vmatprep.subr.mxu0 0.0
    %253 = vmatpush1.msra.mxu0 %v233
    %254 = vmatprep.subr.mxu0 0.0
    %255 = vmatpush1.msra.mxu0 %v234
    %256 = vmatprep.subr.mxu0 0.0
    %257 = vmatpush1.msra.mxu0 %v235
    %258 = vmatprep.subr.mxu0 0.0
    %259 = vmatpush1.msra.mxu0 %v236
    %260 = vmatprep.subr.mxu0 0.0
    %261 = vmatpush1.msra.mxu0 %v237
    %262 = vmatprep.subr.mxu0 0.0
    %263 = vmatpush1.msra.mxu0 %v238
    %264 = vmatprep.subr.mxu0 0.0
    %265 = vmatpush1.msra.mxu0 %v239
    %266 = vmatprep.subr.mxu0 0.0
    %267 = vmatpush1.msra.mxu0 0.0
    %268 = vmatprep.subr.mxu0 0.0
    %269 = vmatpush1.msra.mxu0 0.0
    %270 = vmatprep.subr.mxu0 0.0
    %271 = vmatpush1.msra.mxu0 0.0
    %272 = vmatprep.subr.mxu0 0.0
    %273 = vmatpush1.msra.mxu0 0.0
    %274 = vmatprep.subr.mxu0 0.0
    %275 = vmatpush1.msra.mxu0 0.0
    %276 = vmatprep.subr.mxu0 0.0
    %277 = vmatpush1.msra.mxu0 0.0
    %278 = vmatprep.subr.mxu0 0.0
    %279 = vmatpush1.msra.mxu0 0.0
    %280 = vmatprep.subr.mxu0 0.0
    %281 = vmatpush1.msra.mxu0 0.0
    %282 = vmatprep.subr.mxu0 0.0
    %283 = vmatpush1.msra.mxu0 0.0
    %284 = vmatprep.subr.mxu0 0.0
    %285 = vmatpush1.msra.mxu0 0.0
    %286 = vmatprep.subr.mxu0 0.0
    %287 = vmatpush1.msra.mxu0 0.0
    %288 = vmatprep.subr.mxu0 0.0
    %289 = vmatpush1.msra.mxu0 0.0
    %290 = vmatprep.subr.mxu0 0.0
    %291 = vmatpush1.msra.mxu0 0.0
    %292 = vmatprep.subr.mxu0 0.0
    %293 = vmatpush1.msra.mxu0 0.0
    %294 = vmatprep.subr.mxu0 0.0
    %295 = vmatpush1.msra.mxu0 0.0
    %296 = vmatprep.subr.mxu0 0.0
    %297 = vmatpush1.msra.mxu0 0.0
    %298 = vmatprep.subr.mxu0 0.0
    %299 = vmatpush1.msra.mxu0 0.0
    %300 = vmatprep.subr.mxu0 0.0
    %301 = vmatpush1.msra.mxu0 0.0
    %302 = vmatprep.subr.mxu0 0.0
    %303 = vmatpush1.msra.mxu0 0.0
    %304 = vmatprep.subr.mxu0 0.0
    %305 = vmatpush1.msra.mxu0 0.0
    %306 = vmatprep.subr.mxu0 0.0
    %307 = vmatpush1.msra.mxu0 0.0
    %308 = vmatprep.subr.mxu0 0.0
    %309 = vmatpush1.msra.mxu0 0.0
    %310 = vmatprep.subr.mxu0 0.0
    %311 = vmatpush1.msra.mxu0 0.0
    %312 = vmatprep.subr.mxu0 0.0
    %313 = vmatpush1.msra.mxu0 0.0
    %314 = vmatprep.mubr.f32.mxu0 0.0
    %315 = vmatmul.mubr.f32.gmra.mrb[0].mxu0 %v248
    %v316 = vpop.f32.mrb[0].mxu0
    %v317 = vadd.f32 %v245, %v316
    %v318 = vpop.f32.mrb[0].mxu0
    %319 = vdwg.mxu0
    %v320 = vlaneseq
    %v321 = vand.u32 %v320, 127
    %vm322 = vcmp.lt.s32.totalorder %v321, 4
    %v323 = vsel %vm322, %v317, -1e+30
    %324 = vmax.xlane.f32.xlu0 %v323
    %v325 = vpop.xlane.xlu0 %324
    %v326 = vsub.f32 %v323, %v325
    %v327 = vmul.f32 %v326, 1.442695
    %v328 = vpow.pop %v327
    %v329 = vsel %vm322, %v328, 0.0
    %330 = vadd.xlane.f32.xlu0 %v329
    %v331 = vpop.xlane.xlu0 %330
    %v332 = vlog2.pop %v331
    %v333 = vmul.f32 %v332, 0.6931472
    %v334 = vsub.f32 %v326, %v333
    %v335 = vsel %vm322, %v334, 0.0
    %v336 = vmul.f32 %v334, 1.442695
    %v337 = vpow.pop %v336
    %v338 = vsel %vm322, %v337, 0.0
    %v339 = vld [vmem:[%s1] sm:$0xff]
    %340 = vset.pattern.permute.xlu0 0
    %341 = vperm.xlu0 %340, %v339
    %v342 = vpop.permute.xlu0 %341
    %vm343 = vcmp.eq.s32.totalorder %v321, %v342
    %v344 = vsel %vm343, 1, 0
    %v345 = vcvt.s32.f32 %v344
    %v346 = vmul.f32 %v345, %v335
    %347 = vadd.xlane.f32.xlu0 %v346
    %v348 = vpop.xlane.xlu0 %347
    %v349 = vmul.f32 %v338, %v335
    %350 = vadd.xlane.f32.xlu0 %v349
    %v351 = vpop.xlane.xlu0 %350
    %v352 = vsub.f32 0.0, %v351
    %vm353 = vcmp.eq.s32.totalorder %v321, 4
    %v354 = vsel %vm353, %v317, 0.0
    %v355 = vadd.f32 %v338, %v354
    %vm356 = vcmp.eq.s32.totalorder %v321, 5
    %v357 = vsel %vm356, %v348, 0.0
    %v358 = vadd.f32 %v355, %v357
    %vm359 = vcmp.eq.s32.totalorder %v321, 6
    %v360 = vsel %vm359, %v352, 0.0
    %v361 = vadd.f32 %v358, %v360
    %362 = vst [vmem:[#allocation7] sm:$0xff] %v361
    // Predicated region
    $region42: #{tpu_custom_call.1} parent=1 // pred_check
      _
    $region43: #{tpu_custom_call.1} parent=1 // pred_check_branch
      %364 = sbr.rel (0) target = $region45
    $region44: #{tpu_custom_call.1} parent=1 // pred_region
      %s366 = ssub.s32 128, 128
      %367 = vsyncadd [#allocation4], %s366
      %s369 = sshll.u32 [#allocation7], 4
      %s370 = int_to_ptr.vmem [resolvable:$true] %s369
      %372 = dma.vmem_to_hbm [thread:$0]  %s370, 128, %s8, [#allocation4]
    $region45: #{tpu_custom_call.1} parent=1 // pred_fallthru
      _
    // Predicated region
    $region46: #{tpu_custom_call.1} parent=1 // pred_check
      _
    $region47: #{tpu_custom_call.1} parent=1 // pred_check_branch
      %374 = sbr.rel (0) target = $region49
    $region48: #{tpu_custom_call.1} parent=1 // pred_region
      %375 = dma.done [#allocation4], 128
    $region49: #{tpu_custom_call.1} parent=1 // pred_fallthru
      _
    %376 = vsyncpa [#allocation3], 1
    %377 = vsyncpa [#allocation6], 1
    %378 = vsyncpa [#allocation4], 1

</llo_original>
